<compile_context>
chip_gen: v7x
topology: tpu7x:2x2x1
jax: 0.10.0
libtpu: 0.0.40
codegen_flags: <defaults>
</compile_context>

<pallas_src>
import jax
import jax.numpy as jnp
from jax.experimental import pallas as pl
from jax.experimental.pallas import tpu as pltpu


def _dain_kernel(x_ref, w1_ref, b1_ref, w2_ref, b2_ref, o_ref):
    # x_ref block: (TB, S, D) -- TB batch elements per grid step.
    x = x_ref[...].astype(jnp.float32)                 # (TB, S, D)
    S = x.shape[1]
    D = x.shape[2]

    # 1) per-feature stats over the seq axis (unbiased std, matches torch.std).
    #    NOTE: requires S >= 2 (S == 1 yields NaN in torch as well).
    mu = jnp.mean(x, axis=1, keepdims=True)            # (TB, 1, D)
    d = x - mu                                         # (TB, S, D) sole full-tile temp
    var = jnp.sum(d * d, axis=1, keepdims=True) / jnp.float32(S - 1)
    sigma = jnp.sqrt(var) + jnp.float32(1e-5)          # (TB, 1, D)
    # Exact (non-approx) reciprocal: tiny (TB,1,D) op, keeps 1e-5 parity with
    # the divide-based reference.
    inv_sigma = pl.reciprocal(sigma, approx=False)     # (TB, 1, D)

    # 2) global_feature = mean(x_norm, dim=1) == 0 exactly (x_norm is
    #    seq-mean-centered), so feed the fused gamma/beta MLP a zero vector
    #    instead of paying another full (TB,S,D) reduction pass.
    # TODO(synk): if the intended DAIN feeds a pre-normalization summary
    # (e.g. mean(x, 1)), substitute it for gf0 and batch the dots over TB.
    gf0 = jnp.zeros((1, D), jnp.float32)
    h = jnp.maximum(
        jnp.dot(gf0, w1_ref[...], preferred_element_type=jnp.float32) + b1_ref[...],
        0.0)                                           # (1, 2H)
    gb = jnp.dot(h, w2_ref[...], preferred_element_type=jnp.float32) + b2_ref[...]
    gamma = gb[:, :D][:, None, :]                      # (1, 1, D)
    beta = gb[:, D:][:, None, :]                       # (1, 1, D)

    # 3) fused normalize + gated affine: one pass over the tile.
    scale = gamma * inv_sigma                          # (TB, 1, D)
    o_ref[...] = (scale * d + beta).astype(o_ref.dtype)


def _vmem_budget():
    """Generation-aware (working_set_ceiling_bytes, vmem_limit_bytes, min_grid_steps)."""
    try:
        vmem = pltpu.get_tpu_info().vmem_capacity_bytes
    except Exception:
        vmem = None
    if vmem is not None and vmem >= 100 * 1024 * 1024:
        # v5e / v6e: 128 MiB physical VMEM, single TensorCore -> big tiles,
        # no need for >=2 grid steps.
        return 80 * 1024 * 1024, 96 * 1024 * 1024, 1
    # v7x (64 MiB, 2 TensorCores) or unknown: conservative, keep >=2 parallel
    # steps so both cores get work.
    return 40 * 1024 * 1024, 48 * 1024 * 1024, 2


def _choose_tb(B, S, D, ws_budget, min_grid_steps):
    """Pick the per-step batch tile TB from the PADDED VMEM footprint.

    Working-set model per grid step (all sized as f32, conservative):
      2x input double-buffer + 2x output double-buffer + ~3 live f32 temps
      = 7 block-sized buffers, each TB * ceil(S/8)*8 * ceil(D/128)*128 * 4 B.
    """
    pad_s = -(-S // 8) * 8
    pad_d = -(-D // 128) * 128
    per_row = pad_s * pad_d * 4                       # padded f32 bytes / batch row
    budget_rows = max(1, ws_budget // (7 * per_row))
    num_steps = max(min_grid_steps, -(-B // budget_rows))
    tb = -(-B // num_steps)                           # balanced; ragged tail handled by cdiv grid
    return tb


def dain_forward(x, params):
    """x: (B, S, D) float32. params: weights in (in, out) layout, biases (1, out)."""
    B, S, D = x.shape
    H = params["w1_gamma"].shape[1]

    # Fuse the gamma/beta MLPs once in the wrapper (tiny, outside the kernel):
    #   first layer : concat      -> (D, 2H)
    #   second layer: block-diag  -> (2H, 2D); cols [0:D]=gamma, [D:2D]=beta
    w1 = jnp.concatenate([params["w1_gamma"], params["w1_beta"]], axis=1)   # (D, 2H)
    b1 = jnp.concatenate([params["b1_gamma"], params["b1_beta"]], axis=1)   # (1, 2H)
    w2 = jnp.zeros((2 * H, 2 * D), x.dtype)
    w2 = w2.at[:H, :D].set(params["w2_gamma"]).at[H:, D:].set(params["w2_beta"])
    b2 = jnp.concatenate([params["b2_gamma"], params["b2_beta"]], axis=1)   # (1, 2D)

    ws_budget, vmem_limit, min_steps = _vmem_budget()
    TB = _choose_tb(B, S, D, ws_budget, min_steps)
    grid = (pl.cdiv(B, TB),)   # ragged tail: OOB rows read garbage, writes discarded

    # Constant index_maps => these blocks are fetched once and stay resident.
    full = lambda shape: pl.BlockSpec(shape, lambda b: (0,) * len(shape))

    return pl.pallas_call(
        _dain_kernel,
        out_shape=jax.ShapeDtypeStruct((B, S, D), x.dtype),
        grid=grid,
        in_specs=[
            pl.BlockSpec((TB, S, D), lambda b: (b, 0, 0)),   # x
            full((D, 2 * H)), full((1, 2 * H)),              # fused first layer
            full((2 * H, 2 * D)), full((1, 2 * D)),          # fused second layer
        ],
        out_specs=pl.BlockSpec((TB, S, D), lambda b: (b, 0, 0)),
        compiler_params=pltpu.CompilerParams(
            dimension_semantics=("parallel",),
            vmem_limit_bytes=vmem_limit,
        ),
    )(x, w1, b1, w2, b2)


def dain_reference(x, params):
    """Pure-JAX reference mirroring the PyTorch forward exactly."""
    S = x.shape[1]
    mu = jnp.mean(x, axis=1, keepdims=True)
    var = jnp.sum((x - mu) ** 2, axis=1, keepdims=True) / (S - 1)
    sigma = jnp.sqrt(var) + 1e-5
    x_norm = (x - mu) / sigma
    gf = jnp.mean(x_norm, axis=1)                                   # (B, D)
    hg = jnp.maximum(gf @ params["w1_gamma"] + params["b1_gamma"], 0.0)
    gamma = hg @ params["w2_gamma"] + params["b2_gamma"]            # (B, D)
    hb = jnp.maximum(gf @ params["w1_beta"] + params["b1_beta"], 0.0)
    beta = hb @ params["w2_beta"] + params["b2_beta"]               # (B, D)
    return gamma[:, None, :] * x_norm + beta[:, None, :]


def init_params(key, input_dim, hidden_dim):
    ks = jax.random.split(key, 8)
    scale1 = 1.0 / jnp.sqrt(input_dim)
    scale2 = 1.0 / jnp.sqrt(hidden_dim)
    return {
        "w1_gamma": jax.random.uniform(ks[0], (input_dim, hidden_dim), jnp.float32, -scale1, scale1),
        "b1_gamma": jax.random.uniform(ks[1], (1, hidden_dim), jnp.float32, -scale1, scale1),
        "w2_gamma": jax.random.uniform(ks[2], (hidden_dim, input_dim), jnp.float32, -scale2, scale2),
        "b2_gamma": jax.random.uniform(ks[3], (1, input_dim), jnp.float32, -scale2, scale2),
        "w1_beta":  jax.random.uniform(ks[4], (input_dim, hidden_dim), jnp.float32, -scale1, scale1),
        "b1_beta":  jax.random.uniform(ks[5], (1, hidden_dim), jnp.float32, -scale1, scale1),
        "w2_beta":  jax.random.uniform(ks[6], (hidden_dim, input_dim), jnp.float32, -scale2, scale2),
        "b2_beta":  jax.random.uniform(ks[7], (1, input_dim), jnp.float32, -scale2, scale2),
    }


if __name__ == "__main__":
    B, S, D, H = 2, 8, 4, 32   # batch, seq_len, input_dim, hidden_dim

    key = jax.random.PRNGKey(0)
    k_x, k_p = jax.random.split(key)
    x = jax.random.normal(k_x, (B, S, D), dtype=jnp.float32)
    params = init_params(k_p, D, H)

    out = dain_forward(x, params)
    out = jax.block_until_ready(out)

    ref = dain_reference(x, params)
    assert out.shape == (B, S, D)
    assert bool(jnp.all(jnp.isfinite(out))), "non-finite values in Pallas output"
    assert jnp.allclose(out, ref, atol=1e-5, rtol=1e-5), "Pallas output mismatch vs reference"

    print("KERNEL_OK")
</pallas_src>

<mosaic_0001>
module attributes {stable_mosaic.version = 11 : i64} {
  func.func @_dain_kernel(%arg0: i32, %arg1: memref<1x8x4xf32, #tpu.memory_space<vmem>>, %arg2: memref<4x64xf32, #tpu.memory_space<vmem>>, %arg3: memref<1x64xf32, #tpu.memory_space<vmem>>, %arg4: memref<64x8xf32, #tpu.memory_space<vmem>>, %arg5: memref<1x8xf32, #tpu.memory_space<vmem>>, %arg6: memref<1x8x4xf32, #tpu.memory_space<vmem>>) attributes {dimension_semantics = [#tpu.dimension_semantics<parallel>], iteration_bounds = array<i64: 2>, scalar_prefetch = 0 : i64, scratch_operands = 0 : i64, tpu.core_type = #tpu.core_type<tc>, window_params = [{transform_indices = @transform_0, window_bounds = array<i64: 1, 8, 4>}, {pipeline_mode = #tpu.pipeline_mode<synchronous>, transform_indices = @transform_1, window_bounds = array<i64: 4, 64>}, {pipeline_mode = #tpu.pipeline_mode<synchronous>, transform_indices = @transform_2, window_bounds = array<i64: 1, 64>}, {pipeline_mode = #tpu.pipeline_mode<synchronous>, transform_indices = @transform_3, window_bounds = array<i64: 64, 8>}, {pipeline_mode = #tpu.pipeline_mode<synchronous>, transform_indices = @transform_4, window_bounds = array<i64: 1, 8>}, {transform_indices = @transform_5, window_bounds = array<i64: 1, 8, 4>}]} {
    %c0 = arith.constant 0 : index
    %c0_0 = arith.constant 0 : index
    %c0_1 = arith.constant 0 : index
    %0 = vector.load %arg1[%c0, %c0_0, %c0_1] : memref<1x8x4xf32, #tpu.memory_space<vmem>>, vector<1x8x4xf32>
    %cst = arith.constant dense<0.000000e+00> : vector<1x4xf32>
    %1 = vector.multi_reduction <add>, %0, %cst [1] : vector<1x8x4xf32> to vector<1x4xf32>
    %2 = vector.shape_cast %1 : vector<1x4xf32> to vector<1x1x4xf32>
    %cst_2 = arith.constant 8.000000e+00 : f32
    %3 = vector.broadcast %cst_2 : f32 to vector<1x1x4xf32>
    %4 = arith.divf %2, %3 : vector<1x1x4xf32>
    %5 = vector.broadcast %4 : vector<1x1x4xf32> to vector<1x8x4xf32>
    %6 = arith.subf %0, %5 : vector<1x8x4xf32>
    %7 = arith.mulf %6, %6 : vector<1x8x4xf32>
    %cst_3 = arith.constant dense<0.000000e+00> : vector<1x4xf32>
    %8 = vector.multi_reduction <add>, %7, %cst_3 [1] : vector<1x8x4xf32> to vector<1x4xf32>
    %9 = vector.shape_cast %8 : vector<1x4xf32> to vector<1x1x4xf32>
    %cst_4 = arith.constant 7.000000e+00 : f32
    %10 = vector.broadcast %cst_4 : f32 to vector<1x1x4xf32>
    %11 = arith.divf %9, %10 : vector<1x1x4xf32>
    %12 = math.sqrt %11 : vector<1x1x4xf32>
    %cst_5 = arith.constant 9.99999974E-6 : f32
    %13 = vector.broadcast %cst_5 : f32 to vector<1x1x4xf32>
    %14 = arith.addf %12, %13 : vector<1x1x4xf32>
    %15 = tpu.reciprocal %14 : vector<1x1x4xf32> -> vector<1x1x4xf32>
    %cst_6 = arith.constant 0.000000e+00 : f32
    %16 = vector.broadcast %cst_6 : f32 to vector<1x4xf32>
    %c0_7 = arith.constant 0 : index
    %c0_8 = arith.constant 0 : index
    %17 = vector.load %arg2[%c0_7, %c0_8] : memref<4x64xf32, #tpu.memory_space<vmem>>, vector<4x64xf32>
    %cst_9 = arith.constant dense<0.000000e+00> : vector<1x64xf32>
    %18 = tpu.matmul %16, %17, %cst_9 {dimension_numbers = #tpu.dot_dimension_numbers<[1], [0], [0], [1], [0, 0, 1, 1], [], []>} : vector<1x4xf32>, vector<4x64xf32>, vector<1x64xf32> -> vector<1x64xf32>
    %c0_10 = arith.constant 0 : index
    %c0_11 = arith.constant 0 : index
    %19 = vector.load %arg3[%c0_10, %c0_11] : memref<1x64xf32, #tpu.memory_space<vmem>>, vector<1x64xf32>
    %20 = arith.addf %18, %19 : vector<1x64xf32>
    %cst_12 = arith.constant 0.000000e+00 : f32
    %21 = vector.broadcast %cst_12 : f32 to vector<1x64xf32>
    %22 = arith.maximumf %20, %21 : vector<1x64xf32>
    %c0_13 = arith.constant 0 : index
    %c0_14 = arith.constant 0 : index
    %23 = vector.load %arg4[%c0_13, %c0_14] : memref<64x8xf32, #tpu.memory_space<vmem>>, vector<64x8xf32>
    %cst_15 = arith.constant dense<0.000000e+00> : vector<1x8xf32>
    %24 = tpu.matmul %22, %23, %cst_15 {dimension_numbers = #tpu.dot_dimension_numbers<[1], [0], [0], [1], [0, 0, 1, 1], [], []>} : vector<1x64xf32>, vector<64x8xf32>, vector<1x8xf32> -> vector<1x8xf32>
    %c0_16 = arith.constant 0 : index
    %c0_17 = arith.constant 0 : index
    %25 = vector.load %arg5[%c0_16, %c0_17] : memref<1x8xf32, #tpu.memory_space<vmem>>, vector<1x8xf32>
    %26 = arith.addf %24, %25 : vector<1x8xf32>
    %27 = vector.extract_strided_slice %26 {offsets = [0, 0], sizes = [1, 4], strides = [1, 1]} : vector<1x8xf32> to vector<1x4xf32>
    %28 = vector.shape_cast %27 : vector<1x4xf32> to vector<1x1x4xf32>
    %29 = vector.extract_strided_slice %26 {offsets = [0, 4], sizes = [1, 4], strides = [1, 1]} : vector<1x8xf32> to vector<1x4xf32>
    %30 = vector.shape_cast %29 : vector<1x4xf32> to vector<1x1x4xf32>
    %31 = arith.mulf %28, %15 : vector<1x1x4xf32>
    %32 = vector.broadcast %31 : vector<1x1x4xf32> to vector<1x8x4xf32>
    %33 = arith.mulf %32, %6 : vector<1x8x4xf32>
    %34 = vector.broadcast %30 : vector<1x1x4xf32> to vector<1x8x4xf32>
    %35 = arith.addf %33, %34 : vector<1x8x4xf32>
    %c0_18 = arith.constant 0 : index
    %c0_19 = arith.constant 0 : index
    %c0_20 = arith.constant 0 : index
    %36 = vector.load %arg6[%c0_18, %c0_19, %c0_20] : memref<1x8x4xf32, #tpu.memory_space<vmem>>, vector<1x8x4xf32>
    tpu.vector_store %arg6[%c0_18, %c0_19, %c0_20], %35 {strides = array<i32>} : memref<1x8x4xf32, #tpu.memory_space<vmem>>, vector<1x8x4xf32>,
    return
  }
  func.func @transform_0(%arg0: i32) -> (i32, i32, i32) {
    %c0_i32 = arith.constant 0 : i32
    %c0_i32_0 = arith.constant 0 : i32
    %c0_i32_1 = arith.constant 0 : i32
    return %arg0, %c0_i32, %c0_i32_0 : i32, i32, i32
  }
  func.func @transform_1(%arg0: i32) -> (i32, i32) {
    %c0_i32 = arith.constant 0 : i32
    %c0_i32_0 = arith.constant 0 : i32
    %c0_i32_1 = arith.constant 0 : i32
    return %c0_i32, %c0_i32_0 : i32, i32
  }
  func.func @transform_2(%arg0: i32) -> (i32, i32) {
    %c0_i32 = arith.constant 0 : i32
    %c0_i32_0 = arith.constant 0 : i32
    %c0_i32_1 = arith.constant 0 : i32
    return %c0_i32, %c0_i32_0 : i32, i32
  }
  func.func @transform_3(%arg0: i32) -> (i32, i32) {
    %c0_i32 = arith.constant 0 : i32
    %c0_i32_0 = arith.constant 0 : i32
    %c0_i32_1 = arith.constant 0 : i32
    return %c0_i32, %c0_i32_0 : i32, i32
  }
  func.func @transform_4(%arg0: i32) -> (i32, i32) {
    %c0_i32 = arith.constant 0 : i32
    %c0_i32_0 = arith.constant 0 : i32
    %c0_i32_1 = arith.constant 0 : i32
    return %c0_i32, %c0_i32_0 : i32, i32
  }
  func.func @transform_5(%arg0: i32) -> (i32, i32, i32) {
    %c0_i32 = arith.constant 0 : i32
    %c0_i32_0 = arith.constant 0 : i32
    %c0_i32_1 = arith.constant 0 : i32
    return %arg0, %c0_i32, %c0_i32_0 : i32, i32, i32
  }
}

</mosaic_0001>

<llo_original>
// kernel: tpu_custom_call.1
$region0: #{tpu_custom_call.1}
  #allocation0 [shape = 'u32[]', space=smem, size = 0x4, offset = 0x4, fixed_abs, tag = 'smem constant byte address 0x4 - core index']
  #allocation1 [shape = 'u32[144,128]{1,0:T(1,128)}', space=vmem, size = 0x12000, scoped, tag = 'internal scratch']
  %s0 = inlined_call_operand.vmem [shape: f32[2,8,4], index: 0, kind: input, shape index: {}]
  %s1 = inlined_call_operand.vmem [shape: f32[4,64], index: 1, kind: input, shape index: {}]
  %s2 = inlined_call_operand.vmem [shape: f32[1,64], index: 2, kind: input, shape index: {}]
  %s3 = inlined_call_operand.vmem [shape: f32[64,8], index: 3, kind: input, shape index: {}]
  %s4 = inlined_call_operand.vmem [shape: f32[1,8], index: 4, kind: input, shape index: {}]
  %s5 = inlined_call_operand.vmem [shape: f32[2,8,4], index: 5, kind: output, shape index: {}]
  %s6 = sld [smem:[#allocation0]]
  $region53: #{tpu_custom_call.1} parent=0
    _
  %s8 = ssub.s32 1, %s6
  %s9 = scalar_select 0, %s8, %s6
  loop: start=0, step=1, limit=4
  $region2: #{tpu_custom_call.1} parent=0 // loop_pre_header
    _
  $region3: #{tpu_custom_call.1} parent=0 // loop_header
    %s11 = sphi 0, %s15
    %p12 = scmp.ge.s32.totalorder %s11, 4
    %s21 = sphi 0, %s23
    %s24 = sphi 0, %s21
    %s25 = sphi 0, %s24
    %s41 = sphi 0, %s25
    %s45 = sphi 0, %s45
    %s47 = sphi 0, %s45
    %s48 = sphi 0, %s47
    %s62 = sphi 0, %s48
    %s66 = sphi 0, %s66
    %s68 = sphi 0, %s66
    %s69 = sphi 0, %s68
    %s83 = sphi 0, %s69
    %s87 = sphi 0, %s87
    %s89 = sphi 0, %s87
    %s90 = sphi 0, %s89
    %s104 = sphi 0, %s90
    %s108 = sphi 0, %s108
    %s110 = sphi 0, %s108
    %s111 = sphi 0, %s110
    %s125 = sphi 0, %s111
    %s131 = sphi 0, %s133
    %s134 = sphi 0, %s131
    %s135 = sphi 0, %s134
    %s151 = sphi 0, %s135
  $region4: #{tpu_custom_call.1} parent=0 // loop_header_branch
    %14 = sbr.rel (%p12) target = $region8
  $region5: #{tpu_custom_call.1} parent=0 // loop_body
    %s16 = ssub.s32 %s11, 1
    %s17 = ssub.s32 %s11, 2
    %s18 = sadd.s32 %s11, 1
    %s19 = ssub.s32 %s11, %s18
    %p20 = scmp.eq.s32.totalorder %s19, 0
    %s22 = sadd.s32 %s21, 1
    %s23 = scalar_select %p20, %s21, %s22
    %p26 = pneg %p20
    %p27 = scmp.eq.s32.totalorder %s11, 1
    %p28 = por %p26, %p27
    %p29 = scmp.ne.s32.totalorder %s21, %s24
    %p30 = scmp.eq.s32.totalorder %s11, 0
    %p31 = por %p29, %p30
    %p32 = scmp.ne.s32.totalorder %s21, %s24
    %p33 = scmp.eq.s32.totalorder %s16, 1
    %p34 = por %p32, %p33
    %p35 = scmp.ne.s32.totalorder %s24, %s25
    %p36 = scmp.eq.s32.totalorder %s16, 0
    %p37 = por %p35, %p36
    %p38 = scmp.ne.s32.totalorder %s24, %s25
    %p39 = scmp.eq.s32.totalorder %s17, 1
    %p40 = por %p38, %p39
    %p42 = scmp.ne.s32.totalorder %s25, %s41
    %p43 = scmp.eq.s32.totalorder %s17, 0
    %p44 = por %p42, %p43
    %s46 = sadd.s32 %s45, 1
    %p49 = scmp.eq.s32.totalorder %s11, 1
    %p50 = scmp.ne.s32.totalorder %s45, %s47
    %p51 = scmp.eq.s32.totalorder %s11, 0
    %p52 = por %p50, %p51
    %p53 = scmp.ne.s32.totalorder %s45, %s47
    %p54 = scmp.eq.s32.totalorder %s16, 1
    %p55 = por %p53, %p54
    %p56 = scmp.ne.s32.totalorder %s47, %s48
    %p57 = scmp.eq.s32.totalorder %s16, 0
    %p58 = por %p56, %p57
    %p59 = scmp.ne.s32.totalorder %s47, %s48
    %p60 = scmp.eq.s32.totalorder %s17, 1
    %p61 = por %p59, %p60
    %p63 = scmp.ne.s32.totalorder %s48, %s62
    %p64 = scmp.eq.s32.totalorder %s17, 0
    %p65 = por %p63, %p64
    %s67 = sadd.s32 %s66, 1
    %p70 = scmp.eq.s32.totalorder %s11, 1
    %p71 = scmp.ne.s32.totalorder %s66, %s68
    %p72 = scmp.eq.s32.totalorder %s11, 0
    %p73 = por %p71, %p72
    %p74 = scmp.ne.s32.totalorder %s66, %s68
    %p75 = scmp.eq.s32.totalorder %s16, 1
    %p76 = por %p74, %p75
    %p77 = scmp.ne.s32.totalorder %s68, %s69
    %p78 = scmp.eq.s32.totalorder %s16, 0
    %p79 = por %p77, %p78
    %p80 = scmp.ne.s32.totalorder %s68, %s69
    %p81 = scmp.eq.s32.totalorder %s17, 1
    %p82 = por %p80, %p81
    %p84 = scmp.ne.s32.totalorder %s69, %s83
    %p85 = scmp.eq.s32.totalorder %s17, 0
    %p86 = por %p84, %p85
    %s88 = sadd.s32 %s87, 1
    %p91 = scmp.eq.s32.totalorder %s11, 1
    %p92 = scmp.ne.s32.totalorder %s87, %s89
    %p93 = scmp.eq.s32.totalorder %s11, 0
    %p94 = por %p92, %p93
    %p95 = scmp.ne.s32.totalorder %s87, %s89
    %p96 = scmp.eq.s32.totalorder %s16, 1
    %p97 = por %p95, %p96
    %p98 = scmp.ne.s32.totalorder %s89, %s90
    %p99 = scmp.eq.s32.totalorder %s16, 0
    %p100 = por %p98, %p99
    %p101 = scmp.ne.s32.totalorder %s89, %s90
    %p102 = scmp.eq.s32.totalorder %s17, 1
    %p103 = por %p101, %p102
    %p105 = scmp.ne.s32.totalorder %s90, %s104
    %p106 = scmp.eq.s32.totalorder %s17, 0
    %p107 = por %p105, %p106
    %s109 = sadd.s32 %s108, 1
    %p112 = scmp.eq.s32.totalorder %s11, 1
    %p113 = scmp.ne.s32.totalorder %s108, %s110
    %p114 = scmp.eq.s32.totalorder %s11, 0
    %p115 = por %p113, %p114
    %p116 = scmp.ne.s32.totalorder %s108, %s110
    %p117 = scmp.eq.s32.totalorder %s16, 1
    %p118 = por %p116, %p117
    %p119 = scmp.ne.s32.totalorder %s110, %s111
    %p120 = scmp.eq.s32.totalorder %s16, 0
    %p121 = por %p119, %p120
    %p122 = scmp.ne.s32.totalorder %s110, %s111
    %p123 = scmp.eq.s32.totalorder %s17, 1
    %p124 = por %p122, %p123
    %p126 = scmp.ne.s32.totalorder %s111, %s125
    %p127 = scmp.eq.s32.totalorder %s17, 0
    %p128 = por %p126, %p127
    %s129 = ssub.s32 %s11, %s18
    %p130 = scmp.eq.s32.totalorder %s129, 0
    %s132 = sadd.s32 %s131, 1
    %s133 = scalar_select %p130, %s131, %s132
    %p136 = pneg %p130
    %p137 = scmp.eq.s32.totalorder %s11, 1
    %p138 = por %p136, %p137
    %p139 = scmp.ne.s32.totalorder %s131, %s134
    %p140 = scmp.eq.s32.totalorder %s11, 0
    %p141 = por %p139, %p140
    %p142 = scmp.ne.s32.totalorder %s131, %s134
    %p143 = scmp.eq.s32.totalorder %s16, 1
    %p144 = por %p142, %p143
    %p145 = scmp.ne.s32.totalorder %s134, %s135
    %p146 = scmp.eq.s32.totalorder %s16, 0
    %p147 = por %p145, %p146
    %p148 = scmp.ne.s32.totalorder %s134, %s135
    %p149 = scmp.eq.s32.totalorder %s17, 1
    %p150 = por %p148, %p149
    %p152 = scmp.ne.s32.totalorder %s135, %s151
    %p153 = scmp.eq.s32.totalorder %s17, 0
    %p154 = por %p152, %p153
    %p155 = scmp.le.s32.totalorder 1, %s11
    %p156 = scmp.lt.s32.totalorder %s11, 3
    %p157 = pnand %p155, %p156
    %p158 = pneg %p157
    // Predicated region
    $region9: #{tpu_custom_call.1} parent=5 // pred_check
      _
    $region10: #{tpu_custom_call.1} parent=5 // pred_check_branch
      %160 = sbr.rel (%p157) target = $region12
    $region11: #{tpu_custom_call.1} parent=5 // pred_region
      %s161 = ssub.s32 %s11, 1
      // Predicated region
      $region13: #{tpu_custom_call.1} parent=11 // pred_check
        %p162 = pneg %p58
      $region14: #{tpu_custom_call.1} parent=11 // pred_check_branch
        %164 = sbr.rel (%p162) target = $region16
      $region15: #{tpu_custom_call.1} parent=11 // pred_region
        _
      $region16: #{tpu_custom_call.1} parent=11 // pred_fallthru
        _
      // Predicated region
      $region17: #{tpu_custom_call.1} parent=11 // pred_check
        %p165 = pneg %p79
      $region18: #{tpu_custom_call.1} parent=11 // pred_check_branch
        %167 = sbr.rel (%p165) target = $region20
      $region19: #{tpu_custom_call.1} parent=11 // pred_region
        _
      $region20: #{tpu_custom_call.1} parent=11 // pred_fallthru
        _
      // Predicated region
      $region21: #{tpu_custom_call.1} parent=11 // pred_check
        %p168 = pneg %p100
      $region22: #{tpu_custom_call.1} parent=11 // pred_check_branch
        %170 = sbr.rel (%p168) target = $region24
      $region23: #{tpu_custom_call.1} parent=11 // pred_region
        _
      $region24: #{tpu_custom_call.1} parent=11 // pred_fallthru
        _
      // Predicated region
      $region25: #{tpu_custom_call.1} parent=11 // pred_check
        %p171 = pneg %p121
      $region26: #{tpu_custom_call.1} parent=11 // pred_check_branch
        %173 = sbr.rel (%p171) target = $region28
      $region27: #{tpu_custom_call.1} parent=11 // pred_region
        _
      $region28: #{tpu_custom_call.1} parent=11 // pred_fallthru
        _
    $region12: #{tpu_custom_call.1} parent=5 // pred_fallthru
      _
    %p174 = scmp.lt.s32.totalorder %s11, 2
    // Predicated region
    $region29: #{tpu_custom_call.1} parent=5 // pred_check
      %p175 = pneg %p174
    $region30: #{tpu_custom_call.1} parent=5 // pred_check_branch
      %177 = sbr.rel (%p175) target = $region32
    $region31: #{tpu_custom_call.1} parent=5 // pred_region
      // Predicated region
      $region33: #{tpu_custom_call.1} parent=31 // pred_check
        %p178 = pneg %p31
      $region34: #{tpu_custom_call.1} parent=31 // pred_check_branch
        %180 = sbr.rel (%p178) target = $region36
      $region35: #{tpu_custom_call.1} parent=31 // pred_region
        %p181 = scmp.lt.s32.totalorder %s11, 1
        %s182 = scalar_select %p181, %s11, 1
        %s183 = smul.addr %s182, 8
        %s184 = scalar_lea.vmem %s0, %s183
      $region36: #{tpu_custom_call.1} parent=31 // pred_fallthru
        _
    $region32: #{tpu_custom_call.1} parent=5 // pred_fallthru
      _
    %p185 = scmp.le.s32.totalorder 1, %s11
    %p186 = scmp.lt.s32.totalorder %s11, 3
    %p187 = pnand %p185, %p186
    %p188 = pneg %p187
    // Predicated region
    $region37: #{tpu_custom_call.1} parent=5 // pred_check
      _
    $region38: #{tpu_custom_call.1} parent=5 // pred_check_branch
      %190 = sbr.rel (%p187) target = $region40
    $region39: #{tpu_custom_call.1} parent=5 // pred_region
      %s191 = ssub.s32 %s11, 1
      %p192 = scmp.lt.s32.totalorder %s16, 1
      %s193 = scalar_select %p192, %s16, 1
      %s194 = smul.addr %s193, 8
      %s195 = scalar_lea.vmem %s0, %s194
      %p196 = pneg %p37
      %p197 = pneg %p34
      %p198 = pneg %p58
      %p199 = pneg %p55
      %p200 = pneg %p79
      %p201 = pneg %p76
      %p202 = pneg %p100
      %p203 = pneg %p97
      %p204 = pneg %p121
      %p205 = pneg %p118
      %p206 = pneg %p147
      %p207 = pneg %p144
      %p208 = scmp.lt.s32.totalorder %s16, 1
      %s209 = scalar_select %p208, %s16, 1
      %s210 = smul.addr %s209, 8
      %s211 = scalar_lea.vmem %s5, %s210
      %p212 = scmp.lt.s32.totalorder %s16, 1
      %s213 = scalar_select %p212, %s16, 1
      %s214 = smul.addr %s213, 8
      %s215 = scalar_lea.vmem %s0, %s214
      %p216 = scmp.lt.s32.totalorder %s16, 1
      %s217 = scalar_select %p216, %s16, 1
      %s218 = smul.addr %s217, 8
      %s219 = scalar_lea.vmem %s5, %s218
      %v220 = vld [vmem:[%s215] sm:$0xff]
      %vm221 = vcmask 31744
      %v222 = vsel %vm221, %v220, 0.0
      %v223 = vrot.slane %v222, 4
      %v224 = vadd.f32 %v222, %v223
      %v225 = vrot.slane %v224, 2
      %v226 = vadd.f32 %v224, %v225
      %v227 = vrot.slane %v226, 1
      %v228 = vadd.f32 %v226, %v227
      %v229 = vrcp.pop 8.0
      %v230 = vmul.f32 %v228, %v229
      %v231 = vsub.f32 %v220, %v230
      %v232 = vmul.f32 %v231, %v231
      %v233 = vsel %vm221, %v232, 0.0
      %v234 = vrot.slane %v233, 4
      %v235 = vadd.f32 %v233, %v234
      %v236 = vrot.slane %v235, 2
      %v237 = vadd.f32 %v235, %v236
      %v238 = vrot.slane %v237, 1
      %v239 = vadd.f32 %v237, %v238
      %v240 = vrcp.pop 7.0
      %v241 = vmul.f32 %v239, %v240
      %v242 = vrsqrt.pop %v241
      %v243 = vmul.f32 %v241, %v242
      %vm244 = vcmp.eq.f32.partialorder %v241, inf
      %v245 = vsel %vm244, %v241, %v243
      %vm246 = vcmp.eq.f32.partialorder %v241, 0.0
      %v247 = vand.u32 %v241, 2147483648
      %v248 = vsel %vm246, %v247, %v245
      %v249 = vadd.f32 %v248, 1e-05
      %v250 = vrcp.pop %v249
      %v251 = vld [vmem:[%s1] sm:$0xf]
      %v252 = vld [vmem:[%s2] sm:$0x1]
      %v254 = vsel %vm221, 0.0, 0
      %vm256 = vcmask 1043456
      %v258 = vsel %vm256, %v251, 0
      %260 = vmatprep.subr.mxu0 0.0
      %261 = vmatpush1.msra.mxu0 %v258
      %262 = vmatprep.subr.mxu0 0.0
      %263 = vmatpush1.msra.mxu0 0.0
      %264 = vmatprep.subr.mxu0 0.0
      %265 = vmatpush1.msra.mxu0 0.0
      %266 = vmatprep.subr.mxu0 0.0
      %267 = vmatpush1.msra.mxu0 0.0
      %268 = vmatprep.subr.mxu0 0.0
      %269 = vmatpush1.msra.mxu0 0.0
      %270 = vmatprep.subr.mxu0 0.0
      %271 = vmatpush1.msra.mxu0 0.0
      %272 = vmatprep.subr.mxu0 0.0
      %273 = vmatpush1.msra.mxu0 0.0
      %274 = vmatprep.subr.mxu0 0.0
      %275 = vmatpush1.msra.mxu0 0.0
      %276 = vmatprep.subr.mxu0 0.0
      %277 = vmatpush1.msra.mxu0 0.0
      %278 = vmatprep.subr.mxu0 0.0
      %279 = vmatpush1.msra.mxu0 0.0
      %280 = vmatprep.subr.mxu0 0.0
      %281 = vmatpush1.msra.mxu0 0.0
      %282 = vmatprep.subr.mxu0 0.0
      %283 = vmatpush1.msra.mxu0 0.0
      %284 = vmatprep.subr.mxu0 0.0
      %285 = vmatpush1.msra.mxu0 0.0
      %286 = vmatprep.subr.mxu0 0.0
      %287 = vmatpush1.msra.mxu0 0.0
      %288 = vmatprep.subr.mxu0 0.0
      %289 = vmatpush1.msra.mxu0 0.0
      %290 = vmatprep.subr.mxu0 0.0
      %291 = vmatpush1.msra.mxu0 0.0
      %292 = vmatprep.subr.mxu0 0.0
      %293 = vmatpush1.msra.mxu0 0.0
      %294 = vmatprep.subr.mxu0 0.0
      %295 = vmatpush1.msra.mxu0 0.0
      %296 = vmatprep.subr.mxu0 0.0
      %297 = vmatpush1.msra.mxu0 0.0
      %298 = vmatprep.subr.mxu0 0.0
      %299 = vmatpush1.msra.mxu0 0.0
      %300 = vmatprep.subr.mxu0 0.0
      %301 = vmatpush1.msra.mxu0 0.0
      %302 = vmatprep.subr.mxu0 0.0
      %303 = vmatpush1.msra.mxu0 0.0
      %304 = vmatprep.subr.mxu0 0.0
      %305 = vmatpush1.msra.mxu0 0.0
      %306 = vmatprep.subr.mxu0 0.0
      %307 = vmatpush1.msra.mxu0 0.0
      %308 = vmatprep.subr.mxu0 0.0
      %309 = vmatpush1.msra.mxu0 0.0
      %310 = vmatprep.subr.mxu0 0.0
      %311 = vmatpush1.msra.mxu0 0.0
      %312 = vmatprep.subr.mxu0 0.0
      %313 = vmatpush1.msra.mxu0 0.0
      %314 = vmatprep.subr.mxu0 0.0
      %315 = vmatpush1.msra.mxu0 0.0
      %316 = vmatprep.subr.mxu0 0.0
      %317 = vmatpush1.msra.mxu0 0.0
      %318 = vmatprep.subr.mxu0 0.0
      %319 = vmatpush1.msra.mxu0 0.0
      %320 = vmatprep.subr.mxu0 0.0
      %321 = vmatpush1.msra.mxu0 0.0
      %322 = vmatprep.subr.mxu0 0.0
      %323 = vmatpush1.msra.mxu0 0.0
      %324 = vmatprep.mubr.f32.mxu0 0.0
      %325 = vmatmul.mubr.f32.gmra.mrb[0].mxu0 %v254
      %v326 = vpop.f32.mrb[0].mxu0
      %v327 = vadd.f32 %v252, %v326
      %v328 = vpop.f32.mrb[0].mxu0
      %329 = vdwg.mxu0
      %v330 = vmax.f32 %v327, 0.0
      %v331 = vld [vmem:[%s3] sm:$0xff]
      %v332 = vld [vmem:[%s3 + $0x8] sm:$0xff]
      %v333 = vld [vmem:[%s3 + $0x10] sm:$0xff]
      %v334 = vld [vmem:[%s3 + $0x18] sm:$0xff]
      %v335 = vld [vmem:[%s3 + $0x20] sm:$0xff]
      %v336 = vld [vmem:[%s3 + $0x28] sm:$0xff]
      %v337 = vld [vmem:[%s3 + $0x30] sm:$0xff]
      %v338 = vld [vmem:[%s3 + $0x38] sm:$0xff]
      %v339 = vld [vmem:[%s4] sm:$0x1]
      %vm340 = vcmask 523264
      %v342 = vsel %vm340, %v330, 0
      %344 = vmatprep.subr.mxu0 0.0
      %345 = vmatpush1.msra.mxu0 %v331
      %346 = vmatprep.subr.mxu0 0.0
      %347 = vmatpush1.msra.mxu0 %v332
      %348 = vmatprep.subr.mxu0 0.0
      %349 = vmatpush1.msra.mxu0 %v333
      %350 = vmatprep.subr.mxu0 0.0
      %351 = vmatpush1.msra.mxu0 %v334
      %352 = vmatprep.subr.mxu0 0.0
      %353 = vmatpush1.msra.mxu0 %v335
      %354 = vmatprep.subr.mxu0 0.0
      %355 = vmatpush1.msra.mxu0 %v336
      %356 = vmatprep.subr.mxu0 0.0
      %357 = vmatpush1.msra.mxu0 %v337
      %358 = vmatprep.subr.mxu0 0.0
      %359 = vmatpush1.msra.mxu0 %v338
      %360 = vmatprep.subr.mxu0 0.0
      %361 = vmatpush1.msra.mxu0 0.0
      %362 = vmatprep.subr.mxu0 0.0
      %363 = vmatpush1.msra.mxu0 0.0
      %364 = vmatprep.subr.mxu0 0.0
      %365 = vmatpush1.msra.mxu0 0.0
      %366 = vmatprep.subr.mxu0 0.0
      %367 = vmatpush1.msra.mxu0 0.0
      %368 = vmatprep.subr.mxu0 0.0
      %369 = vmatpush1.msra.mxu0 0.0
      %370 = vmatprep.subr.mxu0 0.0
      %371 = vmatpush1.msra.mxu0 0.0
      %372 = vmatprep.subr.mxu0 0.0
      %373 = vmatpush1.msra.mxu0 0.0
      %374 = vmatprep.subr.mxu0 0.0
      %375 = vmatpush1.msra.mxu0 0.0
      %376 = vmatprep.subr.mxu0 0.0
      %377 = vmatpush1.msra.mxu0 0.0
      %378 = vmatprep.subr.mxu0 0.0
      %379 = vmatpush1.msra.mxu0 0.0
      %380 = vmatprep.subr.mxu0 0.0
      %381 = vmatpush1.msra.mxu0 0.0
      %382 = vmatprep.subr.mxu0 0.0
      %383 = vmatpush1.msra.mxu0 0.0
      %384 = vmatprep.subr.mxu0 0.0
      %385 = vmatpush1.msra.mxu0 0.0
      %386 = vmatprep.subr.mxu0 0.0
      %387 = vmatpush1.msra.mxu0 0.0
      %388 = vmatprep.subr.mxu0 0.0
      %389 = vmatpush1.msra.mxu0 0.0
      %390 = vmatprep.subr.mxu0 0.0
      %391 = vmatpush1.msra.mxu0 0.0
      %392 = vmatprep.subr.mxu0 0.0
      %393 = vmatpush1.msra.mxu0 0.0
      %394 = vmatprep.subr.mxu0 0.0
      %395 = vmatpush1.msra.mxu0 0.0
      %396 = vmatprep.subr.mxu0 0.0
      %397 = vmatpush1.msra.mxu0 0.0
      %398 = vmatprep.subr.mxu0 0.0
      %399 = vmatpush1.msra.mxu0 0.0
      %400 = vmatprep.subr.mxu0 0.0
      %401 = vmatpush1.msra.mxu0 0.0
      %402 = vmatprep.subr.mxu0 0.0
      %403 = vmatpush1.msra.mxu0 0.0
      %404 = vmatprep.subr.mxu0 0.0
      %405 = vmatpush1.msra.mxu0 0.0
      %406 = vmatprep.subr.mxu0 0.0
      %407 = vmatpush1.msra.mxu0 0.0
      %408 = vmatprep.mubr.f32.mxu0 0.0
      %409 = vmatmul.mubr.f32.gmra.mrb[0].mxu0 %v342
      %v410 = vpop.f32.mrb[0].mxu0
      %v411 = vadd.f32 %v339, %v410
      %v412 = vpop.f32.mrb[0].mxu0
      %413 = vdwg.mxu0
      %v414 = vmul.f32 %v411, %v250
      %v415 = vlaneseq
      %v416 = vshrl.u32 %v415, 7
      %v417 = vsub.s32 0, %v416
      %v418 = vrot.slane %v414, %v417
      %v419 = vmul.f32 %v418, %v231
      %v420 = vlaneseq
      %v421 = vshrl.u32 %v420, 7
      %v422 = vsub.s32 0, %v421
      %v423 = vrot.slane %v411, %v422
      %425 = vrot.lane.b32.xlu0 %v423, 124
      %v426 = vpop.permute.xlu0 %425
      %v428 = vadd.f32 %v419, %v426
      %429 = vst.msk [vmem:[%s219] sm:$0xff] %vm221, %v428
      %p430 = scmp.lt.s32.totalorder %s16, 1
      %s431 = scalar_select %p430, %s16, 1
      %s432 = smul.addr %s431, 8
      %s433 = scalar_lea.vmem %s5, %s432
      // Predicated region
      $region41: #{tpu_custom_call.1} parent=39 // pred_check
        %p434 = pneg %p144
      $region42: #{tpu_custom_call.1} parent=39 // pred_check_branch
        %436 = sbr.rel (%p434) target = $region44
      $region43: #{tpu_custom_call.1} parent=39 // pred_region
        _
      $region44: #{tpu_custom_call.1} parent=39 // pred_fallthru
        _
    $region40: #{tpu_custom_call.1} parent=5 // pred_fallthru
      _
    %p437 = scmp.le.s32.totalorder 2, %s11
    // Predicated region
    $region45: #{tpu_custom_call.1} parent=5 // pred_check
      %p438 = pneg %p437
    $region46: #{tpu_custom_call.1} parent=5 // pred_check_branch
      %440 = sbr.rel (%p438) target = $region48
    $region47: #{tpu_custom_call.1} parent=5 // pred_region
      %s441 = ssub.s32 %s11, 2
      // Predicated region
      $region49: #{tpu_custom_call.1} parent=47 // pred_check
        %p442 = pneg %p150
      $region50: #{tpu_custom_call.1} parent=47 // pred_check_branch
        %444 = sbr.rel (%p442) target = $region52
      $region51: #{tpu_custom_call.1} parent=47 // pred_region
        %p445 = scmp.lt.s32.totalorder %s17, 1
        %s446 = scalar_select %p445, %s17, 1
        %s447 = smul.addr %s446, 8
        %s448 = scalar_lea.vmem %s5, %s447
      $region52: #{tpu_custom_call.1} parent=47 // pred_fallthru
        _
    $region48: #{tpu_custom_call.1} parent=5 // pred_fallthru
      _
  $region6: #{tpu_custom_call.1} parent=0 // loop_footer
    %s15 = sadd.s32 1, %s11
  $region7: #{tpu_custom_call.1} parent=0 // loop_footer_branch
    %10 = sbr.rel target = $region3
  $region8: #{tpu_custom_call.1} parent=0 // loop_exit
    _

</llo_original>
